<compile_context>
chip_gen: v6e
topology: v6e:2x2x1
jax: 0.10.0
libtpu: 0.0.40
codegen_flags: <defaults>
</compile_context>

<pallas_src>
import math

import jax
import jax.numpy as jnp
from jax.experimental import pallas as pl
from jax.experimental.pallas import tpu as pltpu

_INV_SQRT2 = 1.0 / math.sqrt(2.0)


def mlp_kernel(x_ref, w1_ref, b1_ref, w2_ref, b2_ref, o_ref, acc_ref):
    """One (row-tile i, hidden-tile h) grid step.

    x_ref  : [tm, C]  row tile of the flattened input (resident across h)
    w1_ref : [C, th]  hidden-column slab of the first weight
    b1_ref : [1, th]  matching slab of the first bias (f32)
    w2_ref : [th, C]  hidden-row slab of the second weight
    b2_ref : [1, C]   second bias (f32, resident)
    o_ref  : [tm, C]  output row tile (resident across the hidden axis)
    acc_ref: VMEM f32 [tm, C] accumulator for the second matmul
    """
    h_idx = pl.program_id(1)

    @pl.when(h_idx == 0)
    def _init():
        acc_ref[...] = jnp.zeros_like(acc_ref)

    # First linear on this hidden slab: [tm, C] @ [C, th] -> f32 (MXU).
    h = jnp.dot(x_ref[...], w1_ref[...], preferred_element_type=jnp.float32)
    h = h + b1_ref[...]
    # Exact GELU (matches nn.GELU() default, approximate='none'):
    #   gelu(x) = 0.5 * x * (1 + erf(x / sqrt(2)))   -- erf runs on the EUP.
    # TODO(synk): switch to tanh-approx GELU if a VALU-bound profile shows the
    # erf path hot and the precision budget allows; kept exact for parity.
    h = 0.5 * h * (1.0 + jax.lax.erf(h * _INV_SQRT2))
    # Partial second linear: [tm, th] @ [th, C], accumulated in f32.
    acc_ref[...] += jnp.dot(
        h.astype(w2_ref.dtype), w2_ref[...], preferred_element_type=jnp.float32
    )

    @pl.when(h_idx == pl.num_programs(1) - 1)
    def _finalize():
        # b2 is added exactly once, on the final hidden step.
        o_ref[...] = (acc_ref[...] + b2_ref[...]).astype(o_ref.dtype)


def mlp_pallas(x, w1, b1, w2, b2, *, tm=256, th=512,
               compute_dtype=None, vmem_limit_bytes=48 * 1024 * 1024):
    """GPT-style MLP forward: GELU(x @ w1 + b1) @ w2 + b2.

    x : [M, C]; w1: [C, H]; b1: [H]; w2: [H, C]; b2: [C]  with H = 4*C.
    tm: row tile (multiple of 8; 128/256 for good MXU occupancy).
    th: hidden tile (multiple of 128 that divides H; otherwise falls back to H).
    compute_dtype: e.g. jnp.bfloat16 to feed the MXU in bf16 (f32 accumulate).
    """
    M, C = x.shape
    H = w1.shape[1]
    out_dtype = x.dtype

    if compute_dtype is not None:
        x = x.astype(compute_dtype)
        w1 = w1.astype(compute_dtype)
        w2 = w2.astype(compute_dtype)

    b1_2d = b1.reshape(1, H).astype(jnp.float32)
    b2_2d = b2.reshape(1, C).astype(jnp.float32)

    # Row tile: clamp for tiny problems, keep a multiple of 8 sublanes,
    # zero-pad M so the grid divides evenly.
    tm = max(8, min(tm, M))
    tm = (tm // 8) * 8
    m_pad = (-M) % tm
    if m_pad:
        x = jnp.pad(x, ((0, m_pad), (0, 0)))
    Mp = M + m_pad

    # Hidden tile: must divide H (fallback: whole H resident per step).
    th = min(th, H)
    if H % th != 0:
        th = H

    grid = (Mp // tm, H // th)

    itemsize = jnp.dtype(x.dtype).itemsize
    cost = pl.CostEstimate(
        flops=4 * Mp * C * H,                      # two matmuls
        transcendentals=Mp * H,                    # erf
        bytes_accessed=(Mp * C + C * H + H * C) * itemsize
        + (H + C) * 4 + Mp * C * jnp.dtype(out_dtype).itemsize,
    )

    out = pl.pallas_call(
        mlp_kernel,
        out_shape=jax.ShapeDtypeStruct((Mp, C), out_dtype),
        grid_spec=pltpu.PrefetchScalarGridSpec(
            num_scalar_prefetch=0,
            grid=grid,
            in_specs=[
                pl.BlockSpec((tm, C), lambda i, h: (i, 0)),   # x row tile (resident in h)
                pl.BlockSpec((C, th), lambda i, h: (0, h)),   # w1 hidden slab
                pl.BlockSpec((1, th), lambda i, h: (0, h)),   # b1 slab
                pl.BlockSpec((th, C), lambda i, h: (h, 0)),   # w2 hidden slab
                pl.BlockSpec((1, C), lambda i, h: (0, 0)),    # b2 (resident)
            ],
            out_specs=pl.BlockSpec((tm, C), lambda i, h: (i, 0)),
            scratch_shapes=[pltpu.VMEM((tm, C), jnp.float32)],
        ),
        compiler_params=pltpu.CompilerParams(
            dimension_semantics=("parallel", "arbitrary"),
            vmem_limit_bytes=vmem_limit_bytes,
        ),
        cost_estimate=cost,
    )(x, w1, b1_2d, w2, b2_2d)

    if m_pad:
        out = out[:M]
    return out


def init_mlp_params(key, n_embed):
    """Deterministic init mimicking nn.Linear defaults (uniform +/- 1/sqrt(fan_in))."""
    hidden = 4 * n_embed
    k1, k2, k3, k4 = jax.random.split(key, 4)
    bound1 = 1.0 / math.sqrt(n_embed)
    bound2 = 1.0 / math.sqrt(hidden)
    w1 = jax.random.uniform(k1, (n_embed, hidden), jnp.float32, -bound1, bound1)
    b1 = jax.random.uniform(k2, (hidden,), jnp.float32, -bound1, bound1)
    w2 = jax.random.uniform(k3, (hidden, n_embed), jnp.float32, -bound2, bound2)
    b2 = jax.random.uniform(k4, (n_embed,), jnp.float32, -bound2, bound2)
    return w1, b1, w2, b2


def mlp_reference(x, w1, b1, w2, b2):
    h = x @ w1 + b1
    h = jax.nn.gelu(h, approximate=False)
    return h @ w2 + b2


if __name__ == "__main__":
    # Small config: n_embed=128 keeps the embed dim lane-dense (multiple of 128)
    # while M=32, H=512 stay tiny.
    batch, seq, n_embed = 2, 16, 128  # hidden = 512, M = 32

    key = jax.random.PRNGKey(0)
    kx, kp = jax.random.split(key)
    x = jax.random.normal(kx, (batch, seq, n_embed), dtype=jnp.float32)
    w1, b1, w2, b2 = init_mlp_params(kp, n_embed)

    x_flat = x.reshape(batch * seq, n_embed)
    # tm=16 / th=256 -> grid=(2, 2): exercises both the parallel row axis and
    # the hidden-reduction accumulator path even at this toy size.
    out_flat = mlp_pallas(x_flat, w1, b1, w2, b2, tm=16, th=256)
    out = out_flat.reshape(batch, seq, n_embed)
    jax.block_until_ready(out)

    # Correctness check vs pure-JAX reference.
    ref = mlp_reference(x_flat, w1, b1, w2, b2).reshape(batch, seq, n_embed)
    assert out.shape == (batch, seq, n_embed)
    assert jnp.allclose(out, ref, atol=1e-4, rtol=1e-4), "mismatch vs reference"

    print("KERNEL_OK")
</pallas_src>

<mosaic_0001>
module attributes {stable_mosaic.version = 11 : i64} {
  func.func @mlp_kernel(%arg0: i32, %arg1: i32, %arg2: memref<16x128xf32, #tpu.memory_space<vmem>>, %arg3: memref<128x256xf32, #tpu.memory_space<vmem>>, %arg4: memref<1x256xf32, #tpu.memory_space<vmem>>, %arg5: memref<256x128xf32, #tpu.memory_space<vmem>>, %arg6: memref<1x128xf32, #tpu.memory_space<vmem>>, %arg7: memref<16x128xf32, #tpu.memory_space<vmem>>, %arg8: memref<16x128xf32, #tpu.memory_space<vmem>>) attributes {dimension_semantics = [#tpu.dimension_semantics<parallel>, #tpu.dimension_semantics<arbitrary>], iteration_bounds = array<i64: 2, 2>, scalar_prefetch = 0 : i64, scratch_operands = 1 : i64, tpu.core_type = #tpu.core_type<tc>, window_params = [{transform_indices = @transform_0, window_bounds = array<i64: 16, 128>}, {transform_indices = @transform_1, window_bounds = array<i64: 128, 256>}, {transform_indices = @transform_2, window_bounds = array<i64: 1, 256>}, {transform_indices = @transform_3, window_bounds = array<i64: 256, 128>}, {pipeline_mode = #tpu.pipeline_mode<synchronous>, transform_indices = @transform_4, window_bounds = array<i64: 1, 128>}, {transform_indices = @transform_5, window_bounds = array<i64: 16, 128>}]} {
    %c0_i32 = arith.constant 0 : i32
    %0 = arith.cmpi eq, %arg1, %c0_i32 : i32
    %1 = arith.extui %0 : i1 to i32
    %c0_i32_0 = arith.constant 0 : i32
    %2 = arith.cmpi ne, %1, %c0_i32_0 : i32
    scf.if %2 {
      %cst_17 = arith.constant 0.000000e+00 : f32
      %25 = vector.broadcast %cst_17 : f32 to vector<16x128xf32>
      %c0_18 = arith.constant 0 : index
      %c0_19 = arith.constant 0 : index
      %26 = vector.load %arg8[%c0_18, %c0_19] : memref<16x128xf32, #tpu.memory_space<vmem>>, vector<16x128xf32>
      tpu.vector_store %arg8[%c0_18, %c0_19], %25 {strides = array<i32>} : memref<16x128xf32, #tpu.memory_space<vmem>>, vector<16x128xf32>,
    } else {
    }
    %c0 = arith.constant 0 : index
    %c0_1 = arith.constant 0 : index
    %3 = vector.load %arg2[%c0, %c0_1] : memref<16x128xf32, #tpu.memory_space<vmem>>, vector<16x128xf32>
    %c0_2 = arith.constant 0 : index
    %c0_3 = arith.constant 0 : index
    %4 = vector.load %arg3[%c0_2, %c0_3] : memref<128x256xf32, #tpu.memory_space<vmem>>, vector<128x256xf32>
    %cst = arith.constant dense<0.000000e+00> : vector<16x256xf32>
    %5 = tpu.matmul %3, %4, %cst {dimension_numbers = #tpu.dot_dimension_numbers<[1], [0], [0], [1], [0, 0, 1, 1], [], []>} : vector<16x128xf32>, vector<128x256xf32>, vector<16x256xf32> -> vector<16x256xf32>
    %c0_4 = arith.constant 0 : index
    %c0_5 = arith.constant 0 : index
    %6 = vector.load %arg4[%c0_4, %c0_5] : memref<1x256xf32, #tpu.memory_space<vmem>>, vector<1x256xf32>
    %7 = vector.broadcast %6 : vector<1x256xf32> to vector<16x256xf32>
    %8 = arith.addf %5, %7 : vector<16x256xf32>
    %cst_6 = arith.constant 5.000000e-01 : f32
    %9 = vector.broadcast %cst_6 : f32 to vector<16x256xf32>
    %10 = arith.mulf %9, %8 : vector<16x256xf32>
    %cst_7 = arith.constant 0.707106769 : f32
    %11 = vector.broadcast %cst_7 : f32 to vector<16x256xf32>
    %12 = arith.mulf %8, %11 : vector<16x256xf32>
    %13 = math.erf %12 : vector<16x256xf32>
    %cst_8 = arith.constant 1.000000e+00 : f32
    %14 = vector.broadcast %cst_8 : f32 to vector<16x256xf32>
    %15 = arith.addf %14, %13 : vector<16x256xf32>
    %16 = arith.mulf %10, %15 : vector<16x256xf32>
    %c0_9 = arith.constant 0 : index
    %c0_10 = arith.constant 0 : index
    %17 = vector.load %arg8[%c0_9, %c0_10] : memref<16x128xf32, #tpu.memory_space<vmem>>, vector<16x128xf32>
    %c0_11 = arith.constant 0 : index
    %c0_12 = arith.constant 0 : index
    %18 = vector.load %arg5[%c0_11, %c0_12] : memref<256x128xf32, #tpu.memory_space<vmem>>, vector<256x128xf32>
    %cst_13 = arith.constant dense<0.000000e+00> : vector<16x128xf32>
    %19 = tpu.matmul %16, %18, %cst_13 {dimension_numbers = #tpu.dot_dimension_numbers<[1], [0], [0], [1], [0, 0, 1, 1], [], []>} : vector<16x256xf32>, vector<256x128xf32>, vector<16x128xf32> -> vector<16x128xf32>
    %20 = arith.addf %17, %19 : vector<16x128xf32>
    %c0_14 = arith.constant 0 : index
    %c0_15 = arith.constant 0 : index
    %21 = vector.load %arg8[%c0_14, %c0_15] : memref<16x128xf32, #tpu.memory_space<vmem>>, vector<16x128xf32>
    tpu.vector_store %arg8[%c0_14, %c0_15], %20 {strides = array<i32>} : memref<16x128xf32, #tpu.memory_space<vmem>>, vector<16x128xf32>,
    %c1_i32 = arith.constant 1 : i32
    %22 = arith.cmpi eq, %arg1, %c1_i32 : i32
    %23 = arith.extui %22 : i1 to i32
    %c0_i32_16 = arith.constant 0 : i32
    %24 = arith.cmpi ne, %23, %c0_i32_16 : i32
    scf.if %24 {
      %c0_17 = arith.constant 0 : index
      %c0_18 = arith.constant 0 : index
      %25 = vector.load %arg8[%c0_17, %c0_18] : memref<16x128xf32, #tpu.memory_space<vmem>>, vector<16x128xf32>
      %c0_19 = arith.constant 0 : index
      %c0_20 = arith.constant 0 : index
      %26 = vector.load %arg6[%c0_19, %c0_20] : memref<1x128xf32, #tpu.memory_space<vmem>>, vector<1x128xf32>
      %27 = vector.broadcast %26 : vector<1x128xf32> to vector<16x128xf32>
      %28 = arith.addf %25, %27 : vector<16x128xf32>
      %c0_21 = arith.constant 0 : index
      %c0_22 = arith.constant 0 : index
      %29 = vector.load %arg7[%c0_21, %c0_22] : memref<16x128xf32, #tpu.memory_space<vmem>>, vector<16x128xf32>
      tpu.vector_store %arg7[%c0_21, %c0_22], %28 {strides = array<i32>} : memref<16x128xf32, #tpu.memory_space<vmem>>, vector<16x128xf32>,
    } else {
    }
    return
  }
  func.func @transform_0(%arg0: i32, %arg1: i32) -> (i32, i32) {
    %c0_i32 = arith.constant 0 : i32
    %c0_i32_0 = arith.constant 0 : i32
    return %arg0, %c0_i32 : i32, i32
  }
  func.func @transform_1(%arg0: i32, %arg1: i32) -> (i32, i32) {
    %c0_i32 = arith.constant 0 : i32
    %c0_i32_0 = arith.constant 0 : i32
    return %c0_i32, %arg1 : i32, i32
  }
  func.func @transform_2(%arg0: i32, %arg1: i32) -> (i32, i32) {
    %c0_i32 = arith.constant 0 : i32
    %c0_i32_0 = arith.constant 0 : i32
    return %c0_i32, %arg1 : i32, i32
  }
  func.func @transform_3(%arg0: i32, %arg1: i32) -> (i32, i32) {
    %c0_i32 = arith.constant 0 : i32
    %c0_i32_0 = arith.constant 0 : i32
    return %arg1, %c0_i32 : i32, i32
  }
  func.func @transform_4(%arg0: i32, %arg1: i32) -> (i32, i32) {
    %c0_i32 = arith.constant 0 : i32
    %c0_i32_0 = arith.constant 0 : i32
    %c0_i32_1 = arith.constant 0 : i32
    return %c0_i32, %c0_i32_0 : i32, i32
  }
  func.func @transform_5(%arg0: i32, %arg1: i32) -> (i32, i32) {
    %c0_i32 = arith.constant 0 : i32
    %c0_i32_0 = arith.constant 0 : i32
    return %arg0, %c0_i32 : i32, i32
  }
}

</mosaic_0001>

<llo_original>
// kernel: tpu_custom_call.1
$region0: #{tpu_custom_call.1}
  #allocation0 [shape = 'u32[]', space=smem, size = 0x4, offset = 0x4, fixed_abs, tag = 'smem constant byte address 0x4 - core index']
  #allocation1 [shape = 'u32[144,128]{1,0:T(1,128)}', space=vmem, size = 0x12000, scoped, tag = 'internal scratch']
  #allocation2 [shape = 'f32[16,128]{1,0:T(8,128)}', space=vmem, size = 0x2000, scoped, tag = 'scratch operand']
  %s0 = inlined_call_operand.hbm [shape: f32[32,128], index: 0, kind: input, shape index: {}]
  %s1 = inlined_call_operand.hbm [shape: f32[128,512], index: 1, kind: input, shape index: {}]
  %s2 = inlined_call_operand.hbm [shape: f32[1,512], index: 2, kind: input, shape index: {}]
  %s3 = inlined_call_operand.hbm [shape: f32[512,128], index: 3, kind: input, shape index: {}]
  %s4 = inlined_call_operand.vmem [shape: f32[1,128], index: 4, kind: input, shape index: {}]
  %s5 = inlined_call_operand.hbm [shape: f32[32,128], index: 5, kind: output, shape index: {}]
  %s6 = sld [smem:[#allocation0]]
  $region77: #{tpu_custom_call.1} parent=0
    _
  %s8 = ssub.s32 1, %s6
  %s9 = scalar_select 0, %s8, %s6
  $region1: #{tpu_custom_call.1} parent=0
    #allocation3 [shape = 'u8[16384]{0}', space=vmem, size = 0x4000, scoped, tag = 'input window, operand 0']
    #allocation4 [shape = 's32[2]{0}', space=sflag, size = 0x8, scoped, tag = 'scoped memory for tpu_custom_call.1']
    #allocation5 [shape = 's32[2]{0}', space=sflag, size = 0x8, scoped, tag = 'scoped memory for tpu_custom_call.1']
    #allocation6 [shape = 'u8[262144]{0}', space=vmem, size = 0x40000, scoped, tag = 'input window, operand 1']
    #allocation7 [shape = 's32[2]{0}', space=sflag, size = 0x8, scoped, tag = 'scoped memory for tpu_custom_call.1']
    #allocation8 [shape = 'u8[2048]{0}', space=vmem, size = 0x800, scoped, tag = 'input window, operand 2']
    #allocation9 [shape = 'u8[262144]{0}', space=vmem, size = 0x40000, scoped, tag = 'input window, operand 3']
    #allocation10 [shape = 's32[2]{0}', space=sflag, size = 0x8, scoped, tag = 'scoped memory for tpu_custom_call.1']
    #allocation11 [shape = 'u8[16384]{0}', space=vmem, size = 0x4000, scoped, tag = 'output window, operand 0']
    %10 = vsyncpa [#allocation4], 0
    %s11 = scalar_lea.sflag [#allocation4], 1
    %12 = vsyncpa %s11, 0
    %13 = vsyncpa [#allocation7], 0
    %s14 = scalar_lea.sflag [#allocation7], 1
    %15 = vsyncpa %s14, 0
    %16 = vsyncpa [#allocation10], 0
    %s17 = scalar_lea.sflag [#allocation10], 1
    %18 = vsyncpa %s17, 0
    %19 = vsyncpa [#allocation5], 0
    %s20 = scalar_lea.sflag [#allocation5], 1
    %21 = vsyncpa %s20, 0
    loop: start=0, step=1, limit=6
    $region2: #{tpu_custom_call.1} parent=1 // loop_pre_header
      _
    $region3: #{tpu_custom_call.1} parent=1 // loop_header
      %s23 = sphi 0, %s27
      %p24 = scmp.ge.s32.totalorder %s23, 6
      %s30 = sphi 0, %s42
      %s31 = sphi 0, %s38
      %s32 = sphi 0, %s30
      %s33 = sphi 0, %s31
      %s34 = sphi 0, %s32
      %s35 = sphi 0, %s33
      %s45 = sphi 0, %s47
      %s48 = sphi 0, %s45
      %s49 = sphi 0, %s48
      %s65 = sphi 0, %s49
      %s71 = sphi 0, %s73
      %s74 = sphi 0, %s71
      %s75 = sphi 0, %s74
      %s91 = sphi 0, %s75
      %s97 = sphi 0, %s99
      %s100 = sphi 0, %s97
      %s101 = sphi 0, %s100
      %s117 = sphi 0, %s101
      %s123 = sphi 0, %s125
      %s126 = sphi 0, %s123
      %s127 = sphi 0, %s126
      %s143 = sphi 0, %s127
      %s147 = sphi 0, %s147
      %s149 = sphi 0, %s147
      %s150 = sphi 0, %s149
      %s164 = sphi 0, %s150
      %s170 = sphi 0, %s172
      %s173 = sphi 0, %s170
      %s174 = sphi 0, %s173
      %s190 = sphi 0, %s174
    $region4: #{tpu_custom_call.1} parent=1 // loop_header_branch
      %26 = sbr.rel (%p24) target = $region8
    $region5: #{tpu_custom_call.1} parent=1 // loop_body
      %s28 = ssub.s32 %s23, 1
      %s29 = ssub.s32 %s23, 2
      %s36 = sadd.s32 1, %s31
      %p37 = scmp.ge.s32.totalorder %s36, 2
      %s38 = scalar_select %p37, 0, %s36
      %s39 = sadd.s32 1, %s30
      %s40 = scalar_select %p37, %s39, %s30
      %p41 = scmp.ge.s32.totalorder %s40, 2
      %s42 = scalar_select %p41, 0, %s40
      %s43 = ssub.s32 %s30, %s42
      %p44 = scmp.eq.s32.totalorder %s43, 0
      %s46 = sadd.s32 %s45, 1
      %s47 = scalar_select %p44, %s45, %s46
      %p50 = pneg %p44
      %p51 = scmp.eq.s32.totalorder %s23, 3
      %p52 = por %p50, %p51
      %p53 = scmp.ne.s32.totalorder %s45, %s48
      %p54 = scmp.eq.s32.totalorder %s23, 0
      %p55 = por %p53, %p54
      %p56 = scmp.ne.s32.totalorder %s45, %s48
      %p57 = scmp.eq.s32.totalorder %s28, 3
      %p58 = por %p56, %p57
      %p59 = scmp.ne.s32.totalorder %s48, %s49
      %p60 = scmp.eq.s32.totalorder %s28, 0
      %p61 = por %p59, %p60
      %p62 = scmp.ne.s32.totalorder %s48, %s49
      %p63 = scmp.eq.s32.totalorder %s29, 3
      %p64 = por %p62, %p63
      %p66 = scmp.ne.s32.totalorder %s49, %s65
      %p67 = scmp.eq.s32.totalorder %s29, 0
      %p68 = por %p66, %p67
      %s69 = ssub.s32 %s31, %s38
      %p70 = scmp.eq.s32.totalorder %s69, 0
      %s72 = sadd.s32 %s71, 1
      %s73 = scalar_select %p70, %s71, %s72
      %p76 = pneg %p70
      %p77 = scmp.eq.s32.totalorder %s23, 3
      %p78 = por %p76, %p77
      %p79 = scmp.ne.s32.totalorder %s71, %s74
      %p80 = scmp.eq.s32.totalorder %s23, 0
      %p81 = por %p79, %p80
      %p82 = scmp.ne.s32.totalorder %s71, %s74
      %p83 = scmp.eq.s32.totalorder %s28, 3
      %p84 = por %p82, %p83
      %p85 = scmp.ne.s32.totalorder %s74, %s75
      %p86 = scmp.eq.s32.totalorder %s28, 0
      %p87 = por %p85, %p86
      %p88 = scmp.ne.s32.totalorder %s74, %s75
      %p89 = scmp.eq.s32.totalorder %s29, 3
      %p90 = por %p88, %p89
      %p92 = scmp.ne.s32.totalorder %s75, %s91
      %p93 = scmp.eq.s32.totalorder %s29, 0
      %p94 = por %p92, %p93
      %s95 = ssub.s32 %s31, %s38
      %p96 = scmp.eq.s32.totalorder %s95, 0
      %s98 = sadd.s32 %s97, 1
      %s99 = scalar_select %p96, %s97, %s98
      %p102 = pneg %p96
      %p103 = scmp.eq.s32.totalorder %s23, 3
      %p104 = por %p102, %p103
      %p105 = scmp.ne.s32.totalorder %s97, %s100
      %p106 = scmp.eq.s32.totalorder %s23, 0
      %p107 = por %p105, %p106
      %p108 = scmp.ne.s32.totalorder %s97, %s100
      %p109 = scmp.eq.s32.totalorder %s28, 3
      %p110 = por %p108, %p109
      %p111 = scmp.ne.s32.totalorder %s100, %s101
      %p112 = scmp.eq.s32.totalorder %s28, 0
      %p113 = por %p111, %p112
      %p114 = scmp.ne.s32.totalorder %s100, %s101
      %p115 = scmp.eq.s32.totalorder %s29, 3
      %p116 = por %p114, %p115
      %p118 = scmp.ne.s32.totalorder %s101, %s117
      %p119 = scmp.eq.s32.totalorder %s29, 0
      %p120 = por %p118, %p119
      %s121 = ssub.s32 %s31, %s38
      %p122 = scmp.eq.s32.totalorder %s121, 0
      %s124 = sadd.s32 %s123, 1
      %s125 = scalar_select %p122, %s123, %s124
      %p128 = pneg %p122
      %p129 = scmp.eq.s32.totalorder %s23, 3
      %p130 = por %p128, %p129
      %p131 = scmp.ne.s32.totalorder %s123, %s126
      %p132 = scmp.eq.s32.totalorder %s23, 0
      %p133 = por %p131, %p132
      %p134 = scmp.ne.s32.totalorder %s123, %s126
      %p135 = scmp.eq.s32.totalorder %s28, 3
      %p136 = por %p134, %p135
      %p137 = scmp.ne.s32.totalorder %s126, %s127
      %p138 = scmp.eq.s32.totalorder %s28, 0
      %p139 = por %p137, %p138
      %p140 = scmp.ne.s32.totalorder %s126, %s127
      %p141 = scmp.eq.s32.totalorder %s29, 3
      %p142 = por %p140, %p141
      %p144 = scmp.ne.s32.totalorder %s127, %s143
      %p145 = scmp.eq.s32.totalorder %s29, 0
      %p146 = por %p144, %p145
      %s148 = sadd.s32 %s147, 1
      %p151 = scmp.eq.s32.totalorder %s23, 3
      %p152 = scmp.ne.s32.totalorder %s147, %s149
      %p153 = scmp.eq.s32.totalorder %s23, 0
      %p154 = por %p152, %p153
      %p155 = scmp.ne.s32.totalorder %s147, %s149
      %p156 = scmp.eq.s32.totalorder %s28, 3
      %p157 = por %p155, %p156
      %p158 = scmp.ne.s32.totalorder %s149, %s150
      %p159 = scmp.eq.s32.totalorder %s28, 0
      %p160 = por %p158, %p159
      %p161 = scmp.ne.s32.totalorder %s149, %s150
      %p162 = scmp.eq.s32.totalorder %s29, 3
      %p163 = por %p161, %p162
      %p165 = scmp.ne.s32.totalorder %s150, %s164
      %p166 = scmp.eq.s32.totalorder %s29, 0
      %p167 = por %p165, %p166
      %s168 = ssub.s32 %s30, %s42
      %p169 = scmp.eq.s32.totalorder %s168, 0
      %s171 = sadd.s32 %s170, 1
      %s172 = scalar_select %p169, %s170, %s171
      %p175 = pneg %p169
      %p176 = scmp.eq.s32.totalorder %s23, 3
      %p177 = por %p175, %p176
      %p178 = scmp.ne.s32.totalorder %s170, %s173
      %p179 = scmp.eq.s32.totalorder %s23, 0
      %p180 = por %p178, %p179
      %p181 = scmp.ne.s32.totalorder %s170, %s173
      %p182 = scmp.eq.s32.totalorder %s28, 3
      %p183 = por %p181, %p182
      %p184 = scmp.ne.s32.totalorder %s173, %s174
      %p185 = scmp.eq.s32.totalorder %s28, 0
      %p186 = por %p184, %p185
      %p187 = scmp.ne.s32.totalorder %s173, %s174
      %p188 = scmp.eq.s32.totalorder %s29, 3
      %p189 = por %p187, %p188
      %p191 = scmp.ne.s32.totalorder %s174, %s190
      %p192 = scmp.eq.s32.totalorder %s29, 0
      %p193 = por %p191, %p192
      %p194 = scmp.le.s32.totalorder 1, %s23
      %p195 = scmp.lt.s32.totalorder %s23, 5
      %p196 = pnand %p194, %p195
      %p197 = pneg %p196
      // Predicated region
      $region9: #{tpu_custom_call.1} parent=5 // pred_check
        _
      $region10: #{tpu_custom_call.1} parent=5 // pred_check_branch
        %199 = sbr.rel (%p196) target = $region12
      $region11: #{tpu_custom_call.1} parent=5 // pred_region
        %s200 = ssub.s32 %s23, 1
        // Predicated region
        $region13: #{tpu_custom_call.1} parent=11 // pred_check
          %p201 = pneg %p160
        $region14: #{tpu_custom_call.1} parent=11 // pred_check_branch
          %203 = sbr.rel (%p201) target = $region16
        $region15: #{tpu_custom_call.1} parent=11 // pred_region
          _
        $region16: #{tpu_custom_call.1} parent=11 // pred_fallthru
          _
      $region12: #{tpu_custom_call.1} parent=5 // pred_fallthru
        _
      %p204 = scmp.lt.s32.totalorder %s23, 4
      // Predicated region
      $region17: #{tpu_custom_call.1} parent=5 // pred_check
        %p205 = pneg %p204
      $region18: #{tpu_custom_call.1} parent=5 // pred_check_branch
        %207 = sbr.rel (%p205) target = $region20
      $region19: #{tpu_custom_call.1} parent=5 // pred_region
        // Predicated region
        $region21: #{tpu_custom_call.1} parent=19 // pred_check
          %p208 = pneg %p55
        $region22: #{tpu_custom_call.1} parent=19 // pred_check_branch
          %210 = sbr.rel (%p208) target = $region24
        $region23: #{tpu_custom_call.1} parent=19 // pred_region
          %s211 = sand.u32 %s45, 1
          %s212 = scalar_lea.sflag [#allocation4], %s211
          %s213 = sand.u32 %s45, 1
          %s214 = smul.addr %s213, 16
          %s215 = scalar_lea.vmem [#allocation3], %s214
          %s216 = smul.u32 2, %s30
          %s218 = ssub.s32 256, 256
          %219 = vsyncadd %s212, %s218
          %s220 = smul.addr %s216, 128
          %s221 = scalar_lea.hbm %s0, %s220
          %s222 = sshll.u32 %s215, 4
          %s223 = int_to_ptr.vmem [resolvable:$true] %s222
          %228 = dma.hbm_to_vmem [thread:$0]  %s221, 256, %s223, %s212, 128, 128, 8
        $region24: #{tpu_custom_call.1} parent=19 // pred_fallthru
          _
        // Predicated region
        $region25: #{tpu_custom_call.1} parent=19 // pred_check
          %p229 = pneg %p81
        $region26: #{tpu_custom_call.1} parent=19 // pred_check_branch
          %231 = sbr.rel (%p229) target = $region28
        $region27: #{tpu_custom_call.1} parent=19 // pred_region
          %s232 = sand.u32 %s23, 1
          %s233 = scalar_lea.sflag [#allocation7], %s232
          %s234 = sand.u32 %s71, 1
          %s235 = smul.addr %s234, 256
          %s236 = scalar_lea.vmem [#allocation6], %s235
          %s237 = smul.u32 2, %s31
          %s239 = ssub.s32 4096, 4096
          %240 = vsyncadd %s233, %s239
          %s241 = smul.addr %s237, 128
          %s242 = scalar_lea.hbm %s1, %s241
          %s243 = sshll.u32 %s236, 4
          %s244 = int_to_ptr.vmem [resolvable:$true] %s243
          %249 = dma.hbm_to_vmem [thread:$0]  %s242, 4096, %s244, %s233, 512, 256, 16
        $region28: #{tpu_custom_call.1} parent=19 // pred_fallthru
          _
        // Predicated region
        $region29: #{tpu_custom_call.1} parent=19 // pred_check
          %p250 = pneg %p107
        $region30: #{tpu_custom_call.1} parent=19 // pred_check_branch
          %252 = sbr.rel (%p250) target = $region32
        $region31: #{tpu_custom_call.1} parent=19 // pred_region
          %s253 = sand.u32 %s23, 1
          %s254 = scalar_lea.sflag [#allocation7], %s253
          %s255 = sand.u32 %s97, 1
          %s256 = smul.addr %s255, 2
          %s257 = scalar_lea.vmem [#allocation8], %s256
          %s258 = smul.u32 2, %s31
          %s260 = ssub.s32 32, 32
          %261 = vsyncadd %s254, %s260
          %s262 = smul.addr %s258, 16
          %s263 = scalar_lea.hbm %s2, %s262
          %s265 = sshll.u32 %s257, 4
          %s266 = int_to_ptr.vmem [resolvable:$true] %s265
          %268 = dma.hbm_to_vmem [thread:$0]  %s263, 32, %s266, %s254
        $region32: #{tpu_custom_call.1} parent=19 // pred_fallthru
          _
        // Predicated region
        $region33: #{tpu_custom_call.1} parent=19 // pred_check
          %p269 = pneg %p133
        $region34: #{tpu_custom_call.1} parent=19 // pred_check_branch
          %271 = sbr.rel (%p269) target = $region36
        $region35: #{tpu_custom_call.1} parent=19 // pred_region
          %s272 = sand.u32 %s123, 1
          %s273 = scalar_lea.sflag [#allocation10], %s272
          %s274 = sand.u32 %s123, 1
          %s275 = smul.addr %s274, 256
          %s276 = scalar_lea.vmem [#allocation9], %s275
          %s277 = smul.u32 32, %s31
          %s279 = ssub.s32 4096, 4096
          %280 = vsyncadd %s273, %s279
          %s281 = smul.addr %s277, 128
          %s282 = scalar_lea.hbm %s3, %s281
          %s283 = sshll.u32 %s276, 4
          %s284 = int_to_ptr.vmem [resolvable:$true] %s283
          %289 = dma.hbm_to_vmem [thread:$0]  %s282, 4096, %s284, %s273, 128, 128, 8
        $region36: #{tpu_custom_call.1} parent=19 // pred_fallthru
          _
      $region20: #{tpu_custom_call.1} parent=5 // pred_fallthru
        _
      %p290 = scmp.le.s32.totalorder 1, %s23
      %p291 = scmp.lt.s32.totalorder %s23, 5
      %p292 = pnand %p290, %p291
      %p293 = pneg %p292
      // Predicated region
      $region37: #{tpu_custom_call.1} parent=5 // pred_check
        _
      $region38: #{tpu_custom_call.1} parent=5 // pred_check_branch
        %295 = sbr.rel (%p292) target = $region40
      $region39: #{tpu_custom_call.1} parent=5 // pred_region
        %s296 = ssub.s32 %s23, 1
        %s297 = sand.u32 %s48, 1
        %s298 = scalar_lea.sflag [#allocation4], %s297
        %s299 = sand.u32 %s48, 1
        %s300 = smul.addr %s299, 16
        %s301 = scalar_lea.vmem [#allocation3], %s300
        // Predicated region
        $region41: #{tpu_custom_call.1} parent=39 // pred_check
          %p302 = pneg %p61
        $region42: #{tpu_custom_call.1} parent=39 // pred_check_branch
          %304 = sbr.rel (%p302) target = $region44
        $region43: #{tpu_custom_call.1} parent=39 // pred_region
          %305 = dma.done %s298, 256
        $region44: #{tpu_custom_call.1} parent=39 // pred_fallthru
          _
        %s306 = sand.u32 %s28, 1
        %s307 = scalar_lea.sflag [#allocation7], %s306
        %s308 = sand.u32 %s74, 1
        %s309 = smul.addr %s308, 256
        %s310 = scalar_lea.vmem [#allocation6], %s309
        // Predicated region
        $region45: #{tpu_custom_call.1} parent=39 // pred_check
          %p311 = pneg %p87
        $region46: #{tpu_custom_call.1} parent=39 // pred_check_branch
          %313 = sbr.rel (%p311) target = $region48
        $region47: #{tpu_custom_call.1} parent=39 // pred_region
          %314 = dma.done %s307, 4096
        $region48: #{tpu_custom_call.1} parent=39 // pred_fallthru
          _
        %s315 = sand.u32 %s28, 1
        %s316 = scalar_lea.sflag [#allocation7], %s315
        %s317 = sand.u32 %s100, 1
        %s318 = smul.addr %s317, 2
        %s319 = scalar_lea.vmem [#allocation8], %s318
        // Predicated region
        $region49: #{tpu_custom_call.1} parent=39 // pred_check
          %p320 = pneg %p113
        $region50: #{tpu_custom_call.1} parent=39 // pred_check_branch
          %322 = sbr.rel (%p320) target = $region52
        $region51: #{tpu_custom_call.1} parent=39 // pred_region
          %323 = dma.done %s316, 32
        $region52: #{tpu_custom_call.1} parent=39 // pred_fallthru
          _
        %s324 = sand.u32 %s126, 1
        %s325 = scalar_lea.sflag [#allocation10], %s324
        %s326 = sand.u32 %s126, 1
        %s327 = smul.addr %s326, 256
        %s328 = scalar_lea.vmem [#allocation9], %s327
        // Predicated region
        $region53: #{tpu_custom_call.1} parent=39 // pred_check
          %p329 = pneg %p139
        $region54: #{tpu_custom_call.1} parent=39 // pred_check_branch
          %331 = sbr.rel (%p329) target = $region56
        $region55: #{tpu_custom_call.1} parent=39 // pred_region
          %332 = dma.done %s325, 4096
        $region56: #{tpu_custom_call.1} parent=39 // pred_fallthru
          _
        %s333 = sand.u32 %s48, 1
        %s334 = scalar_lea.sflag [#allocation4], %s333
        %s335 = sand.u32 %s48, 1
        %s336 = smul.addr %s335, 16
        %s337 = scalar_lea.vmem [#allocation3], %s336
        %p338 = pneg %p61
        %p339 = pneg %p58
        %s340 = sand.u32 %s28, 1
        %s341 = scalar_lea.sflag [#allocation7], %s340
        %s342 = sand.u32 %s74, 1
        %s343 = smul.addr %s342, 256
        %s344 = scalar_lea.vmem [#allocation6], %s343
        %p345 = pneg %p87
        %p346 = pneg %p84
        %s347 = sand.u32 %s28, 1
        %s348 = scalar_lea.sflag [#allocation7], %s347
        %s349 = sand.u32 %s100, 1
        %s350 = smul.addr %s349, 2
        %s351 = scalar_lea.vmem [#allocation8], %s350
        %p352 = pneg %p113
        %p353 = pneg %p110
        %s354 = sand.u32 %s126, 1
        %s355 = scalar_lea.sflag [#allocation10], %s354
        %s356 = sand.u32 %s126, 1
        %s357 = smul.addr %s356, 256
        %s358 = scalar_lea.vmem [#allocation9], %s357
        %p359 = pneg %p139
        %p360 = pneg %p136
        %p361 = pneg %p160
        %p362 = pneg %p157
        %p363 = pneg %p186
        %p364 = pneg %p183
        %s365 = sand.u32 %s173, 1
        %s366 = scalar_lea.sflag [#allocation5], %s365
        %s367 = sand.u32 %s173, 1
        %s368 = smul.addr %s367, 16
        %s369 = scalar_lea.vmem [#allocation11], %s368
        %s370 = smul.u32 2, %s32
        %s371 = smul.u32 2, %s33
        %s372 = smul.u32 2, %s33
        %s373 = smul.u32 32, %s33
        %s374 = smul.u32 2, %s32
        %p375 = scmp.eq.s32.totalorder %s33, 0
        // Predicated region
        $region57: #{tpu_custom_call.1} parent=39 // pred_check
          %p376 = pneg %p375
        $region58: #{tpu_custom_call.1} parent=39 // pred_check_branch
          %378 = sbr.rel (%p376) target = $region60
        $region59: #{tpu_custom_call.1} parent=39 // pred_region
          %379 = vst [vmem:[#allocation2] sm:$0xff] 0.0
          %380 = vst [vmem:[#allocation2 + $0x8] sm:$0xff] 0.0
        $region60: #{tpu_custom_call.1} parent=39 // pred_fallthru
          _
        %v381 = vld [vmem:[%s301] sm:$0xff]
        %v382 = vld [vmem:[%s301 + $0x8] sm:$0xff]
        %v383 = vld [vmem:[%s310] sm:$0xff]
        %v384 = vld [vmem:[%s310 + $0x8] sm:$0xff]
        %v385 = vld [vmem:[%s310 + $0x10] sm:$0xff]
        %v386 = vld [vmem:[%s310 + $0x18] sm:$0xff]
        %v387 = vld [vmem:[%s310 + $0x20] sm:$0xff]
        %v388 = vld [vmem:[%s310 + $0x28] sm:$0xff]
        %v389 = vld [vmem:[%s310 + $0x30] sm:$0xff]
        %v390 = vld [vmem:[%s310 + $0x38] sm:$0xff]
        %v391 = vld [vmem:[%s310 + $0x40] sm:$0xff]
        %v392 = vld [vmem:[%s310 + $0x48] sm:$0xff]
        %v393 = vld [vmem:[%s310 + $0x50] sm:$0xff]
        %v394 = vld [vmem:[%s310 + $0x58] sm:$0xff]
        %v395 = vld [vmem:[%s310 + $0x60] sm:$0xff]
        %v396 = vld [vmem:[%s310 + $0x68] sm:$0xff]
        %v397 = vld [vmem:[%s310 + $0x70] sm:$0xff]
        %v398 = vld [vmem:[%s310 + $0x78] sm:$0xff]
        %v399 = vld [vmem:[%s310 + $0x80] sm:$0xff]
        %v400 = vld [vmem:[%s310 + $0x88] sm:$0xff]
        %v401 = vld [vmem:[%s310 + $0x90] sm:$0xff]
        %v402 = vld [vmem:[%s310 + $0x98] sm:$0xff]
        %v403 = vld [vmem:[%s310 + $0xa0] sm:$0xff]
        %v404 = vld [vmem:[%s310 + $0xa8] sm:$0xff]
        %v405 = vld [vmem:[%s310 + $0xb0] sm:$0xff]
        %v406 = vld [vmem:[%s310 + $0xb8] sm:$0xff]
        %v407 = vld [vmem:[%s310 + $0xc0] sm:$0xff]
        %v408 = vld [vmem:[%s310 + $0xc8] sm:$0xff]
        %v409 = vld [vmem:[%s310 + $0xd0] sm:$0xff]
        %v410 = vld [vmem:[%s310 + $0xd8] sm:$0xff]
        %v411 = vld [vmem:[%s310 + $0xe0] sm:$0xff]
        %v412 = vld [vmem:[%s310 + $0xe8] sm:$0xff]
        %v413 = vld [vmem:[%s310 + $0xf0] sm:$0xff]
        %v414 = vld [vmem:[%s310 + $0xf8] sm:$0xff]
        %v415 = vld [vmem:[%s319] sm:$0x3]
        %v417 = vlaneseq
        %v418 = vshrl.u32 %v417, 7
        %v419 = vsub.s32 0, %v418
        %v420 = vrot.slane %v415, %v419
        %v421 = vlaneseq
        %v422 = vshrl.u32 %v421, 7
        %v423 = vsub.s32 1, %v422
        %v424 = vrot.slane %v415, %v423
        %427 = vmatprep.subr.mxu0 %v414
        %428 = vmatpush1.msra.mxu0 %v413
        %429 = vmatprep.subr.mxu0 %v412
        %430 = vmatpush1.msra.mxu0 %v411
        %431 = vmatprep.subr.mxu0 %v410
        %432 = vmatpush1.msra.mxu0 %v409
        %433 = vmatprep.subr.mxu0 %v408
        %434 = vmatpush1.msra.mxu0 %v407
        %435 = vmatprep.subr.mxu0 %v406
        %436 = vmatpush1.msra.mxu0 %v405
        %437 = vmatprep.subr.mxu0 %v404
        %438 = vmatpush1.msra.mxu0 %v403
        %439 = vmatprep.subr.mxu0 %v402
        %440 = vmatpush1.msra.mxu0 %v401
        %441 = vmatprep.subr.mxu0 %v400
        %442 = vmatpush1.msra.mxu0 %v399
        %443 = vmatprep.subr.mxu0 %v398
        %444 = vmatpush1.msra.mxu0 %v397
        %445 = vmatprep.subr.mxu0 %v396
        %446 = vmatpush1.msra.mxu0 %v395
        %447 = vmatprep.subr.mxu0 %v394
        %448 = vmatpush1.msra.mxu0 %v393
        %449 = vmatprep.subr.mxu0 %v392
        %450 = vmatpush1.msra.mxu0 %v391
        %451 = vmatprep.subr.mxu0 %v390
        %452 = vmatpush1.msra.mxu0 %v389
        %453 = vmatprep.subr.mxu0 %v388
        %454 = vmatpush1.msra.mxu0 %v387
        %455 = vmatprep.subr.mxu0 %v386
        %456 = vmatpush1.msra.mxu0 %v385
        %457 = vmatprep.subr.mxu0 %v384
        %458 = vmatpush1.msra.mxu0 %v383
        %459 = vmatprep.subr.mxu0 0.0
        %460 = vmatpush2.msra.mxu0 0.0
        %461 = vmatprep.subr.mxu0 0.0
        %462 = vmatpush2.msra.mxu0 0.0
        %463 = vmatprep.subr.mxu0 0.0
        %464 = vmatpush2.msra.mxu0 0.0
        %465 = vmatprep.subr.mxu0 0.0
        %466 = vmatpush2.msra.mxu0 0.0
        %467 = vmatprep.subr.mxu0 0.0
        %468 = vmatpush2.msra.mxu0 0.0
        %469 = vmatprep.subr.mxu0 0.0
        %470 = vmatpush2.msra.mxu0 0.0
        %471 = vmatprep.subr.mxu0 0.0
        %472 = vmatpush2.msra.mxu0 0.0
        %473 = vmatprep.subr.mxu0 0.0
        %474 = vmatpush2.msra.mxu0 0.0
        %475 = vmatprep.subr.mxu0 0.0
        %476 = vmatpush2.msra.mxu0 0.0
        %477 = vmatprep.subr.mxu0 0.0
        %478 = vmatpush2.msra.mxu0 0.0
        %479 = vmatprep.subr.mxu0 0.0
        %480 = vmatpush2.msra.mxu0 0.0
        %481 = vmatprep.subr.mxu0 0.0
        %482 = vmatpush2.msra.mxu0 0.0
        %483 = vmatprep.subr.mxu0 0.0
        %484 = vmatpush2.msra.mxu0 0.0
        %485 = vmatprep.subr.mxu0 0.0
        %486 = vmatpush2.msra.mxu0 0.0
        %487 = vmatprep.subr.mxu0 0.0
        %488 = vmatpush2.msra.mxu0 0.0
        %489 = vmatprep.subr.mxu0 0.0
        %490 = vmatpush2.msra.mxu0 0.0
        %491 = vmatprep.mubr.f32.mxu0 0.0
        %492 = vmatmul.mubr.f32.gmra.mxu0 %v381
        %v493 = vpop.f32.mrf.mxu0
        %v494 = vadd.f32 %v420, %v493
        %v495 = vpop.f32.mrf.mxu0
        %v496 = vadd.f32 %v424, %v495
        %497 = vmatprep.mubr.f32.mxu0 0.0
        %498 = vmatmul.mubr.f32.gmra.mxu0 %v382
        %v499 = vpop.f32.mrf.mxu0
        %v500 = vadd.f32 %v420, %v499
        %v501 = vpop.f32.mrf.mxu0
        %v502 = vadd.f32 %v424, %v501
        %503 = vdwg.mxu0
        %v504 = vmul.f32 %v494, 0.5
        %v505 = vmul.f32 %v496, 0.5
        %v506 = vmul.f32 %v500, 0.5
        %v507 = vmul.f32 %v502, 0.5
        %v508 = vmul.f32 %v494, 0.70710677
        %v509 = vmul.f32 %v496, 0.70710677
        %v510 = vmul.f32 %v500, 0.70710677
        %v511 = vmul.f32 %v502, 0.70710677
        %v512 = verf.f32.pop %v508
        %v513 = verf.f32.pop %v509
        %v514 = verf.f32.pop %v510
        %v515 = verf.f32.pop %v511
        %v516 = vadd.f32 %v512, 1.0
        %v517 = vadd.f32 %v513, 1.0
        %v518 = vadd.f32 %v514, 1.0
        %v519 = vadd.f32 %v515, 1.0
        %v520 = vmul.f32 %v504, %v516
        %v521 = vmul.f32 %v505, %v517
        %v522 = vmul.f32 %v506, %v518
        %v523 = vmul.f32 %v507, %v519
        %v524 = vld [vmem:[#allocation2] sm:$0xff]
        %v525 = vld [vmem:[#allocation2 + $0x8] sm:$0xff]
        %v526 = vld [vmem:[%s328] sm:$0xff]
        %v527 = vld [vmem:[%s328 + $0x8] sm:$0xff]
        %v528 = vld [vmem:[%s328 + $0x10] sm:$0xff]
        %v529 = vld [vmem:[%s328 + $0x18] sm:$0xff]
        %v530 = vld [vmem:[%s328 + $0x20] sm:$0xff]
        %v531 = vld [vmem:[%s328 + $0x28] sm:$0xff]
        %v532 = vld [vmem:[%s328 + $0x30] sm:$0xff]
        %v533 = vld [vmem:[%s328 + $0x38] sm:$0xff]
        %v534 = vld [vmem:[%s328 + $0x40] sm:$0xff]
        %v535 = vld [vmem:[%s328 + $0x48] sm:$0xff]
        %v536 = vld [vmem:[%s328 + $0x50] sm:$0xff]
        %v537 = vld [vmem:[%s328 + $0x58] sm:$0xff]
        %v538 = vld [vmem:[%s328 + $0x60] sm:$0xff]
        %v539 = vld [vmem:[%s328 + $0x68] sm:$0xff]
        %v540 = vld [vmem:[%s328 + $0x70] sm:$0xff]
        %v541 = vld [vmem:[%s328 + $0x78] sm:$0xff]
        %v542 = vld [vmem:[%s328 + $0x80] sm:$0xff]
        %v543 = vld [vmem:[%s328 + $0x88] sm:$0xff]
        %v544 = vld [vmem:[%s328 + $0x90] sm:$0xff]
        %v545 = vld [vmem:[%s328 + $0x98] sm:$0xff]
        %v546 = vld [vmem:[%s328 + $0xa0] sm:$0xff]
        %v547 = vld [vmem:[%s328 + $0xa8] sm:$0xff]
        %v548 = vld [vmem:[%s328 + $0xb0] sm:$0xff]
        %v549 = vld [vmem:[%s328 + $0xb8] sm:$0xff]
        %v550 = vld [vmem:[%s328 + $0xc0] sm:$0xff]
        %v551 = vld [vmem:[%s328 + $0xc8] sm:$0xff]
        %v552 = vld [vmem:[%s328 + $0xd0] sm:$0xff]
        %v553 = vld [vmem:[%s328 + $0xd8] sm:$0xff]
        %v554 = vld [vmem:[%s328 + $0xe0] sm:$0xff]
        %v555 = vld [vmem:[%s328 + $0xe8] sm:$0xff]
        %v556 = vld [vmem:[%s328 + $0xf0] sm:$0xff]
        %v557 = vld [vmem:[%s328 + $0xf8] sm:$0xff]
        %558 = vmatprep.subr.mxu0 0.0
        %559 = vmatpush1.msra.mxu0 %v541
        %560 = vmatprep.subr.mxu0 0.0
        %561 = vmatpush1.msra.mxu0 %v540
        %562 = vmatprep.subr.mxu0 0.0
        %563 = vmatpush1.msra.mxu0 %v539
        %564 = vmatprep.subr.mxu0 0.0
        %565 = vmatpush1.msra.mxu0 %v538
        %566 = vmatprep.subr.mxu0 0.0
        %567 = vmatpush1.msra.mxu0 %v537
        %568 = vmatprep.subr.mxu0 0.0
        %569 = vmatpush1.msra.mxu0 %v536
        %570 = vmatprep.subr.mxu0 0.0
        %571 = vmatpush1.msra.mxu0 %v535
        %572 = vmatprep.subr.mxu0 0.0
        %573 = vmatpush1.msra.mxu0 %v534
        %574 = vmatprep.subr.mxu0 0.0
        %575 = vmatpush1.msra.mxu0 %v533
        %576 = vmatprep.subr.mxu0 0.0
        %577 = vmatpush1.msra.mxu0 %v532
        %578 = vmatprep.subr.mxu0 0.0
        %579 = vmatpush1.msra.mxu0 %v531
        %580 = vmatprep.subr.mxu0 0.0
        %581 = vmatpush1.msra.mxu0 %v530
        %582 = vmatprep.subr.mxu0 0.0
        %583 = vmatpush1.msra.mxu0 %v529
        %584 = vmatprep.subr.mxu0 0.0
        %585 = vmatpush1.msra.mxu0 %v528
        %586 = vmatprep.subr.mxu0 0.0
        %587 = vmatpush1.msra.mxu0 %v527
        %588 = vmatprep.subr.mxu0 0.0
        %589 = vmatpush1.msra.mxu0 %v526
        %590 = vmatprep.subr.mxu0 0.0
        %591 = vmatpush2.msra.mxu0 %v557
        %592 = vmatprep.subr.mxu0 0.0
        %593 = vmatpush2.msra.mxu0 %v556
        %594 = vmatprep.subr.mxu0 0.0
        %595 = vmatpush2.msra.mxu0 %v555
        %596 = vmatprep.subr.mxu0 0.0
        %597 = vmatpush2.msra.mxu0 %v554
        %598 = vmatprep.subr.mxu0 0.0
        %599 = vmatpush2.msra.mxu0 %v553
        %600 = vmatprep.subr.mxu0 0.0
        %601 = vmatpush2.msra.mxu0 %v552
        %602 = vmatprep.subr.mxu0 0.0
        %603 = vmatpush2.msra.mxu0 %v551
        %604 = vmatprep.subr.mxu0 0.0
        %605 = vmatpush2.msra.mxu0 %v550
        %606 = vmatprep.subr.mxu0 0.0
        %607 = vmatpush2.msra.mxu0 %v549
        %608 = vmatprep.subr.mxu0 0.0
        %609 = vmatpush2.msra.mxu0 %v548
        %610 = vmatprep.subr.mxu0 0.0
        %611 = vmatpush2.msra.mxu0 %v547
        %612 = vmatprep.subr.mxu0 0.0
        %613 = vmatpush2.msra.mxu0 %v546
        %614 = vmatprep.subr.mxu0 0.0
        %615 = vmatpush2.msra.mxu0 %v545
        %616 = vmatprep.subr.mxu0 0.0
        %617 = vmatpush2.msra.mxu0 %v544
        %618 = vmatprep.subr.mxu0 0.0
        %619 = vmatpush2.msra.mxu0 %v543
        %620 = vmatprep.subr.mxu0 0.0
        %621 = vmatpush2.msra.mxu0 %v542
        %622 = vmatprep.mubr.f32.mxu0 %v521
        %623 = vmatmul.mubr.f32.gmra.mxu0 %v520
        %v624 = vpop.f32.mrf.mxu0
        %v625 = vadd.f32 0.0, %v624
        %v626 = vpop.f32.mrf.mxu0
        %627 = vmatprep.mubr.f32.mxu0 %v523
        %628 = vmatmul.mubr.f32.gmra.mxu0 %v522
        %v629 = vpop.f32.mrf.mxu0
        %v630 = vadd.f32 0.0, %v629
        %v631 = vpop.f32.mrf.mxu0
        %632 = vdwg.mxu0
        %v633 = vadd.f32 %v524, %v625
        %v634 = vadd.f32 %v525, %v630
        %635 = vst [vmem:[#allocation2] sm:$0xff] %v633
        %636 = vst [vmem:[#allocation2 + $0x8] sm:$0xff] %v634
        %p637 = scmp.eq.s32.totalorder %s33, 1
        // Predicated region
        $region61: #{tpu_custom_call.1} parent=39 // pred_check
          %p638 = pneg %p637
        $region62: #{tpu_custom_call.1} parent=39 // pred_check_branch
          %640 = sbr.rel (%p638) target = $region64
        $region63: #{tpu_custom_call.1} parent=39 // pred_region
          %v641 = vld [vmem:[#allocation2] sm:$0xff]
          %v642 = vld [vmem:[#allocation2 + $0x8] sm:$0xff]
          %v643 = vld [vmem:[%s4] sm:$0x1]
          %v645 = vlaneseq
          %v646 = vshrl.u32 %v645, 7
          %v647 = vsub.s32 0, %v646
          %v648 = vrot.slane %v643, %v647
          %v650 = vadd.f32 %v641, %v648
          %v651 = vadd.f32 %v642, %v648
          %652 = vst [vmem:[%s369] sm:$0xff] %v650
          %653 = vst [vmem:[%s369 + $0x8] sm:$0xff] %v651
        $region64: #{tpu_custom_call.1} parent=39 // pred_fallthru
          _
        %s654 = sand.u32 %s173, 1
        %s655 = scalar_lea.sflag [#allocation5], %s654
        %s656 = sand.u32 %s173, 1
        %s657 = smul.addr %s656, 16
        %s658 = scalar_lea.vmem [#allocation11], %s657
        // Predicated region
        $region65: #{tpu_custom_call.1} parent=39 // pred_check
          %p659 = pneg %p183
        $region66: #{tpu_custom_call.1} parent=39 // pred_check_branch
          %661 = sbr.rel (%p659) target = $region68
        $region67: #{tpu_custom_call.1} parent=39 // pred_region
          %s662 = smul.u32 2, %s32
          %s664 = ssub.s32 256, 256
          %665 = vsyncadd %s655, %s664
          %s666 = smul.addr %s662, 128
          %s667 = scalar_lea.hbm %s5, %s666
          %s668 = sshll.u32 %s658, 4
          %s669 = int_to_ptr.vmem [resolvable:$true] %s668
          %674 = dma.vmem_to_hbm [thread:$0]  %s669, 256, %s667, %s655, 128, 128, 8
        $region68: #{tpu_custom_call.1} parent=39 // pred_fallthru
          _
      $region40: #{tpu_custom_call.1} parent=5 // pred_fallthru
        _
      %p675 = scmp.le.s32.totalorder 2, %s23
      // Predicated region
      $region69: #{tpu_custom_call.1} parent=5 // pred_check
        %p676 = pneg %p675
      $region70: #{tpu_custom_call.1} parent=5 // pred_check_branch
        %678 = sbr.rel (%p676) target = $region72
      $region71: #{tpu_custom_call.1} parent=5 // pred_region
        %s679 = ssub.s32 %s23, 2
        // Predicated region
        $region73: #{tpu_custom_call.1} parent=71 // pred_check
          %p680 = pneg %p189
        $region74: #{tpu_custom_call.1} parent=71 // pred_check_branch
          %682 = sbr.rel (%p680) target = $region76
        $region75: #{tpu_custom_call.1} parent=71 // pred_region
          %s683 = sand.u32 %s174, 1
          %s684 = scalar_lea.sflag [#allocation5], %s683
          %s685 = sand.u32 %s174, 1
          %s686 = smul.addr %s685, 16
          %s687 = scalar_lea.vmem [#allocation11], %s686
          %688 = dma.done %s684, 256
        $region76: #{tpu_custom_call.1} parent=71 // pred_fallthru
          _
      $region72: #{tpu_custom_call.1} parent=5 // pred_fallthru
        _
    $region6: #{tpu_custom_call.1} parent=1 // loop_footer
      %s27 = sadd.s32 1, %s23
    $region7: #{tpu_custom_call.1} parent=1 // loop_footer_branch
      %22 = sbr.rel target = $region3
    $region8: #{tpu_custom_call.1} parent=1 // loop_exit
      _
    %689 = vsyncpa [#allocation4], 1
    %s690 = scalar_lea.sflag [#allocation4], 1
    %691 = vsyncpa %s690, 1
    %692 = vsyncpa [#allocation7], 1
    %s693 = scalar_lea.sflag [#allocation7], 1
    %694 = vsyncpa %s693, 1
    %695 = vsyncpa [#allocation10], 1
    %s696 = scalar_lea.sflag [#allocation10], 1
    %697 = vsyncpa %s696, 1
    %698 = vsyncpa [#allocation5], 1
    %s699 = scalar_lea.sflag [#allocation5], 1
    %700 = vsyncpa %s699, 1

</llo_original>
